<compile_context>
chip_gen: v6e
topology: v6e:2x2x1
jax: 0.10.0
libtpu: 0.0.40
codegen_flags: <defaults>
</compile_context>

<pallas_src>
import jax
import jax.numpy as jnp
from jax import lax
from jax.experimental import pallas as pl
from jax.experimental.pallas import tpu as pltpu


def _round_up(x, m):
    return ((x + m - 1) // m) * m


def _demod_conv_kernel(s_ref, d_ref, w_ref, x_ref, o_ref):
    # s_ref: (1, K, 1)        (s+1) tiled over taps, this batch sample (f32)
    # d_ref: (1, out_dim, 1)  demod factor, this batch sample (f32, ones if off)
    # w_ref: (out_dim, K)     flattened weight (shared, compute dtype)
    # x_ref: (1, K, HW_T)     im2col activations, this (batch, hw tile)
    # o_ref: (1, out_dim, HW_T)
    x = x_ref[0]                                        # (K, HW_T)
    x_mod = x * s_ref[0].astype(x.dtype)                # fold modulation into acts
    acc = jnp.dot(w_ref[...], x_mod,                    # single long-K MXU matmul
                  preferred_element_type=jnp.float32)   # (out_dim, HW_T) f32 acc
    acc = acc * d_ref[0]                                # fold demodulation into out
    o_ref[0] = acc.astype(o_ref.dtype)


def demod_conv(x, s, w, *, demod=True, eps=1e-8, hw_tile=None, compute_dtype=None):
    """x: (b, in_dim, h, w), s: (b, in_dim), w: (out_dim, in_dim, k, k).

    compute_dtype: dtype for MXU operands (e.g. jnp.bfloat16 in production);
    None keeps the input dtype. Accumulation / demod math are always f32.
    """
    b, in_dim, h, wdt = x.shape
    out_dim, _, k, _ = w.shape
    # TODO(synk): only odd kernels / stride=1 / dilation=1 handled ('same' pad
    #             is symmetric); PyTorch pads asymmetrically for even kernels.
    pad = (k - 1) // 2
    kk = k * k
    hw = h * wdt
    K = kk * in_dim

    cdtype = jnp.dtype(compute_dtype) if compute_dtype is not None else x.dtype
    out_dtype = x.dtype
    itemsize = jnp.dtype(cdtype).itemsize

    # ---- spatial tile sizing: multiple of 128 lanes, conservative VMEM budget ----
    if hw_tile is None:
        budget = 24 * 1024 * 1024                 # double-buffered x_col stream budget
        t = max(128, (budget // (2 * K * itemsize) // 128) * 128)
        hw_tile = int(min(t, 2048, _round_up(hw, 128)))
    else:
        hw_tile = max(128, (int(hw_tile) // 128) * 128)
    hw_pad = _round_up(hw, hw_tile)
    n_hw = hw_pad // hw_tile

    # ---- glue (data movement only): 'same' pad + im2col, tap-major K axis ----
    x_p = jnp.pad(x, ((0, 0), (0, 0), (pad, pad), (pad, pad)))
    cols = []
    for ky in range(k):
        for kx in range(k):
            cols.append(x_p[:, :, ky:ky + h, kx:kx + wdt].reshape(b, in_dim, hw))
    x_col = jnp.concatenate(cols, axis=1)                         # (b, K, hw)
    if hw_pad != hw:
        x_col = jnp.pad(x_col, ((0, 0), (0, 0), (0, hw_pad - hw)))
    x_col = x_col.astype(cdtype)

    # weight: (out_dim, in_dim, k, k) -> (out_dim, k, k, in_dim) -> (out_dim, K)
    w_flat_f32 = jnp.transpose(w, (0, 2, 3, 1)).reshape(out_dim, K).astype(jnp.float32)
    w_flat = w_flat_f32.astype(cdtype)

    # modulation scale per K index (tap-major, in_dim inner) and demod factor (f32)
    s1 = (s + 1.0).astype(jnp.float32)                            # (b, in_dim)
    s_tiled = jnp.tile(s1, (1, kk))                               # (b, K)
    if demod:
        sumsq = jnp.einsum('ok,bk->bo', w_flat_f32 * w_flat_f32, s_tiled * s_tiled)
        d = lax.rsqrt(sumsq + eps)                                # (b, out_dim)
    else:
        d = jnp.ones((b, out_dim), jnp.float32)
    s_in = s_tiled.reshape(b, K, 1)
    d_in = d.reshape(b, out_dim, 1)

    # ---- VMEM budgeting (explicit limit so v7x's 64 MiB is respected) ----
    x_blk = K * hw_tile * itemsize
    o_blk = out_dim * hw_tile * jnp.dtype(out_dtype).itemsize
    w_bytes = out_dim * K * itemsize
    vmem_need = 2 * (x_blk + o_blk) + w_bytes + 4 * (K + out_dim) * 4
    vmem_limit = int(min(max(vmem_need + (8 << 20), 32 << 20), 100 << 20))

    out = pl.pallas_call(
        _demod_conv_kernel,
        out_shape=jax.ShapeDtypeStruct((b, out_dim, hw_pad), out_dtype),
        grid_spec=pltpu.PrefetchScalarGridSpec(
            num_scalar_prefetch=0,
            grid=(b, n_hw),
            in_specs=[
                pl.BlockSpec((1, K, 1), lambda bi, ji: (bi, 0, 0)),         # s scale
                pl.BlockSpec((1, out_dim, 1), lambda bi, ji: (bi, 0, 0)),   # demod d
                pl.BlockSpec((out_dim, K), lambda bi, ji: (0, 0)),          # weight
                pl.BlockSpec((1, K, hw_tile), lambda bi, ji: (bi, 0, ji)),  # x_col
            ],
            out_specs=pl.BlockSpec((1, out_dim, hw_tile), lambda bi, ji: (bi, 0, ji)),
        ),
        compiler_params=pltpu.CompilerParams(
            dimension_semantics=("parallel", "parallel"),
            vmem_limit_bytes=vmem_limit),
    )(s_in, d_in, w_flat, x_col)

    if hw_pad != hw:
        out = out[:, :, :hw]
    return out.reshape(b, out_dim, h, wdt)


def reference_demod_conv(x, s, w, *, demod=True, eps=1e-8):
    """Pure-JAX reference matching the PyTorch forward exactly."""
    b = x.shape[0]
    weight = jnp.einsum('ijkl,mj->mijkl', w, s + 1.0)             # (b, O, I, k, k)
    if demod:
        weight = weight * lax.rsqrt(
            jnp.sum(weight ** 2, axis=(2, 3, 4), keepdims=True) + eps)
    outs = []
    for i in range(b):
        y = lax.conv_general_dilated(
            x[i:i + 1], weight[i], window_strides=(1, 1), padding='SAME',
            dimension_numbers=('NCHW', 'OIHW', 'NCHW'))
        outs.append(y)
    return jnp.concatenate(outs, axis=0)


if __name__ == "__main__":
    key = jax.random.PRNGKey(0)
    k_w, k_x, k_s = jax.random.split(key, 3)

    # Module config (small, consistent with the forward).
    batch, in_dim, out_dim, kernel_sz, spatial = 2, 4, 8, 3, 16

    # kaiming_normal_(fan_in, leaky_relu, a=0): std = sqrt(2 / (in_dim * k * k))
    fan_in = in_dim * kernel_sz * kernel_sz
    w = jax.random.normal(k_w, (out_dim, in_dim, kernel_sz, kernel_sz),
                          jnp.float32) * jnp.sqrt(2.0 / fan_in)
    x = jax.random.normal(k_x, (batch, in_dim, spatial, spatial), jnp.float32)
    s = jax.random.normal(k_s, (batch, in_dim), jnp.float32)

    # f32 path, demod=True
    out = jax.block_until_ready(demod_conv(x, s, w, demod=True, eps=1e-8))
    ref = jax.block_until_ready(reference_demod_conv(x, s, w, demod=True, eps=1e-8))
    assert out.shape == (batch, out_dim, spatial, spatial)
    assert jnp.allclose(out, ref, atol=1e-4, rtol=1e-4), "demod=True mismatch"

    # f32 path, demod=False
    out_nd = jax.block_until_ready(demod_conv(x, s, w, demod=False))
    ref_nd = jax.block_until_ready(reference_demod_conv(x, s, w, demod=False))
    assert jnp.allclose(out_nd, ref_nd, atol=1e-4, rtol=1e-4), "demod=False mismatch"

    # bf16 MXU operands (f32 accumulation / demod math), looser tolerance.
    out_bf = jax.block_until_ready(
        demod_conv(x, s, w, demod=True, compute_dtype=jnp.bfloat16))
    assert jnp.allclose(out_bf, ref, atol=1e-1, rtol=1e-1), "bf16 path mismatch"

    print("KERNEL_OK")
</pallas_src>

<mosaic_0001>
module attributes {stable_mosaic.version = 11 : i64} {
  func.func @_demod_conv_kernel(%arg0: i32, %arg1: i32, %arg2: memref<1x36x1xf32, #tpu.memory_space<vmem>>, %arg3: memref<1x8x1xf32, #tpu.memory_space<vmem>>, %arg4: memref<8x36xf32, #tpu.memory_space<vmem>>, %arg5: memref<1x36x256xf32, #tpu.memory_space<vmem>>, %arg6: memref<1x8x256xf32, #tpu.memory_space<vmem>>) attributes {dimension_semantics = [#tpu.dimension_semantics<parallel>, #tpu.dimension_semantics<parallel>], iteration_bounds = array<i64: 2, 1>, scalar_prefetch = 0 : i64, scratch_operands = 0 : i64, tpu.core_type = #tpu.core_type<tc>, window_params = [{transform_indices = @transform_0, window_bounds = array<i64: 1, 36, 1>}, {transform_indices = @transform_1, window_bounds = array<i64: 1, 8, 1>}, {pipeline_mode = #tpu.pipeline_mode<synchronous>, transform_indices = @transform_2, window_bounds = array<i64: 8, 36>}, {transform_indices = @transform_3, window_bounds = array<i64: 1, 36, 256>}, {transform_indices = @transform_4, window_bounds = array<i64: 1, 8, 256>}]} {
    %c0 = arith.constant 0 : index
    %c0_0 = arith.constant 0 : index
    %c0_1 = arith.constant 0 : index
    %0 = vector.load %arg5[%c0, %c0_0, %c0_1] : memref<1x36x256xf32, #tpu.memory_space<vmem>>, vector<1x36x256xf32>
    %1 = vector.shape_cast %0 : vector<1x36x256xf32> to vector<36x256xf32>
    %c0_2 = arith.constant 0 : index
    %c0_3 = arith.constant 0 : index
    %c0_4 = arith.constant 0 : index
    %2 = vector.load %arg2[%c0_2, %c0_3, %c0_4] : memref<1x36x1xf32, #tpu.memory_space<vmem>>, vector<1x36x1xf32>
    %3 = vector.shape_cast %2 : vector<1x36x1xf32> to vector<36x1xf32>
    %4 = vector.broadcast %3 : vector<36x1xf32> to vector<36x256xf32>
    %5 = arith.mulf %1, %4 : vector<36x256xf32>
    %c0_5 = arith.constant 0 : index
    %c0_6 = arith.constant 0 : index
    %6 = vector.load %arg4[%c0_5, %c0_6] : memref<8x36xf32, #tpu.memory_space<vmem>>, vector<8x36xf32>
    %cst = arith.constant dense<0.000000e+00> : vector<8x256xf32>
    %7 = tpu.matmul %6, %5, %cst {dimension_numbers = #tpu.dot_dimension_numbers<[1], [0], [0], [1], [0, 0, 1, 1], [], []>} : vector<8x36xf32>, vector<36x256xf32>, vector<8x256xf32> -> vector<8x256xf32>
    %c0_7 = arith.constant 0 : index
    %c0_8 = arith.constant 0 : index
    %c0_9 = arith.constant 0 : index
    %8 = vector.load %arg3[%c0_7, %c0_8, %c0_9] : memref<1x8x1xf32, #tpu.memory_space<vmem>>, vector<1x8x1xf32>
    %9 = vector.shape_cast %8 : vector<1x8x1xf32> to vector<8x1xf32>
    %10 = vector.broadcast %9 : vector<8x1xf32> to vector<8x256xf32>
    %11 = arith.mulf %7, %10 : vector<8x256xf32>
    %c0_10 = arith.constant 0 : index
    %c0_11 = arith.constant 0 : index
    %c0_12 = arith.constant 0 : index
    %12 = vector.load %arg6[%c0_10, %c0_11, %c0_12] : memref<1x8x256xf32, #tpu.memory_space<vmem>>, vector<1x8x256xf32>
    %13 = vector.shape_cast %12 : vector<1x8x256xf32> to vector<8x256xf32>
    %14 = vector.shape_cast %11 : vector<8x256xf32> to vector<1x8x256xf32>
    tpu.vector_store %arg6[%c0_10, %c0_11, %c0_12], %14 {strides = array<i32>} : memref<1x8x256xf32, #tpu.memory_space<vmem>>, vector<1x8x256xf32>,
    return
  }
  func.func @transform_0(%arg0: i32, %arg1: i32) -> (i32, i32, i32) {
    %c0_i32 = arith.constant 0 : i32
    %c0_i32_0 = arith.constant 0 : i32
    %c0_i32_1 = arith.constant 0 : i32
    return %arg0, %c0_i32, %c0_i32_0 : i32, i32, i32
  }
  func.func @transform_1(%arg0: i32, %arg1: i32) -> (i32, i32, i32) {
    %c0_i32 = arith.constant 0 : i32
    %c0_i32_0 = arith.constant 0 : i32
    %c0_i32_1 = arith.constant 0 : i32
    return %arg0, %c0_i32, %c0_i32_0 : i32, i32, i32
  }
  func.func @transform_2(%arg0: i32, %arg1: i32) -> (i32, i32) {
    %c0_i32 = arith.constant 0 : i32
    %c0_i32_0 = arith.constant 0 : i32
    %c0_i32_1 = arith.constant 0 : i32
    return %c0_i32, %c0_i32_0 : i32, i32
  }
  func.func @transform_3(%arg0: i32, %arg1: i32) -> (i32, i32, i32) {
    %c0_i32 = arith.constant 0 : i32
    %c0_i32_0 = arith.constant 0 : i32
    return %arg0, %c0_i32, %arg1 : i32, i32, i32
  }
  func.func @transform_4(%arg0: i32, %arg1: i32) -> (i32, i32, i32) {
    %c0_i32 = arith.constant 0 : i32
    %c0_i32_0 = arith.constant 0 : i32
    return %arg0, %c0_i32, %arg1 : i32, i32, i32
  }
}

</mosaic_0001>

<llo_original>
// kernel: tpu_custom_call.1
$region0: #{tpu_custom_call.1}
  #allocation0 [shape = 'u32[]', space=smem, size = 0x4, offset = 0x4, fixed_abs, tag = 'smem constant byte address 0x4 - core index']
  #allocation1 [shape = 'u32[144,128]{1,0:T(1,128)}', space=vmem, size = 0x12000, scoped, tag = 'internal scratch']
  %s0 = inlined_call_operand.vmem [shape: f32[2,36,1], index: 0, kind: input, shape index: {}]
  %s1 = inlined_call_operand.vmem [shape: f32[2,8,1], index: 1, kind: input, shape index: {}]
  %s2 = inlined_call_operand.vmem [shape: f32[8,36], index: 2, kind: input, shape index: {}]
  %s3 = inlined_call_operand.vmem [shape: f32[2,36,256], index: 3, kind: input, shape index: {}]
  %s4 = inlined_call_operand.hbm [shape: f32[2,8,256], index: 4, kind: output, shape index: {}]
  %s5 = sld [smem:[#allocation0]]
  $region49: #{tpu_custom_call.1} parent=0
    _
  %s7 = ssub.s32 1, %s5
  %s8 = scalar_select 0, %s7, %s5
  $region1: #{tpu_custom_call.1} parent=0
    #allocation2 [shape = 'u8[16384]{0}', space=vmem, size = 0x4000, scoped, tag = 'output window, operand 0']
    #allocation3 [shape = 's32[2]{0}', space=sflag, size = 0x8, scoped, tag = 'scoped memory for tpu_custom_call.1']
    %9 = vsyncpa [#allocation3], 0
    %s10 = scalar_lea.sflag [#allocation3], 1
    %11 = vsyncpa %s10, 0
    loop: start=0, step=1, limit=4
    $region2: #{tpu_custom_call.1} parent=1 // loop_pre_header
      _
    $region3: #{tpu_custom_call.1} parent=1 // loop_header
      %s13 = sphi 0, %s17
      %p14 = scmp.ge.s32.totalorder %s13, 4
      %s20 = sphi 0, %s32
      %s21 = sphi 0, %s28
      %s22 = sphi 0, %s20
      %s23 = sphi 0, %s21
      %s24 = sphi 0, %s22
      %s25 = sphi 0, %s23
      %s35 = sphi 0, %s37
      %s38 = sphi 0, %s35
      %s39 = sphi 0, %s38
      %s55 = sphi 0, %s39
      %s61 = sphi 0, %s63
      %s64 = sphi 0, %s61
      %s65 = sphi 0, %s64
      %s81 = sphi 0, %s65
      %s85 = sphi 0, %s85
      %s87 = sphi 0, %s85
      %s88 = sphi 0, %s87
      %s102 = sphi 0, %s88
      %s110 = sphi 0, %s112
      %s113 = sphi 0, %s110
      %s114 = sphi 0, %s113
      %s130 = sphi 0, %s114
      %s138 = sphi 0, %s140
      %s141 = sphi 0, %s138
      %s142 = sphi 0, %s141
      %s158 = sphi 0, %s142
    $region4: #{tpu_custom_call.1} parent=1 // loop_header_branch
      %16 = sbr.rel (%p14) target = $region8
    $region5: #{tpu_custom_call.1} parent=1 // loop_body
      %s18 = ssub.s32 %s13, 1
      %s19 = ssub.s32 %s13, 2
      %s26 = sadd.s32 1, %s21
      %p27 = scmp.ge.s32.totalorder %s26, 1
      %s28 = scalar_select %p27, 0, %s26
      %s29 = sadd.s32 1, %s20
      %s30 = scalar_select %p27, %s29, %s20
      %p31 = scmp.ge.s32.totalorder %s30, 2
      %s32 = scalar_select %p31, 0, %s30
      %s33 = ssub.s32 %s20, %s32
      %p34 = scmp.eq.s32.totalorder %s33, 0
      %s36 = sadd.s32 %s35, 1
      %s37 = scalar_select %p34, %s35, %s36
      %p40 = pneg %p34
      %p41 = scmp.eq.s32.totalorder %s13, 1
      %p42 = por %p40, %p41
      %p43 = scmp.ne.s32.totalorder %s35, %s38
      %p44 = scmp.eq.s32.totalorder %s13, 0
      %p45 = por %p43, %p44
      %p46 = scmp.ne.s32.totalorder %s35, %s38
      %p47 = scmp.eq.s32.totalorder %s18, 1
      %p48 = por %p46, %p47
      %p49 = scmp.ne.s32.totalorder %s38, %s39
      %p50 = scmp.eq.s32.totalorder %s18, 0
      %p51 = por %p49, %p50
      %p52 = scmp.ne.s32.totalorder %s38, %s39
      %p53 = scmp.eq.s32.totalorder %s19, 1
      %p54 = por %p52, %p53
      %p56 = scmp.ne.s32.totalorder %s39, %s55
      %p57 = scmp.eq.s32.totalorder %s19, 0
      %p58 = por %p56, %p57
      %s59 = ssub.s32 %s20, %s32
      %p60 = scmp.eq.s32.totalorder %s59, 0
      %s62 = sadd.s32 %s61, 1
      %s63 = scalar_select %p60, %s61, %s62
      %p66 = pneg %p60
      %p67 = scmp.eq.s32.totalorder %s13, 1
      %p68 = por %p66, %p67
      %p69 = scmp.ne.s32.totalorder %s61, %s64
      %p70 = scmp.eq.s32.totalorder %s13, 0
      %p71 = por %p69, %p70
      %p72 = scmp.ne.s32.totalorder %s61, %s64
      %p73 = scmp.eq.s32.totalorder %s18, 1
      %p74 = por %p72, %p73
      %p75 = scmp.ne.s32.totalorder %s64, %s65
      %p76 = scmp.eq.s32.totalorder %s18, 0
      %p77 = por %p75, %p76
      %p78 = scmp.ne.s32.totalorder %s64, %s65
      %p79 = scmp.eq.s32.totalorder %s19, 1
      %p80 = por %p78, %p79
      %p82 = scmp.ne.s32.totalorder %s65, %s81
      %p83 = scmp.eq.s32.totalorder %s19, 0
      %p84 = por %p82, %p83
      %s86 = sadd.s32 %s85, 1
      %p89 = scmp.eq.s32.totalorder %s13, 1
      %p90 = scmp.ne.s32.totalorder %s85, %s87
      %p91 = scmp.eq.s32.totalorder %s13, 0
      %p92 = por %p90, %p91
      %p93 = scmp.ne.s32.totalorder %s85, %s87
      %p94 = scmp.eq.s32.totalorder %s18, 1
      %p95 = por %p93, %p94
      %p96 = scmp.ne.s32.totalorder %s87, %s88
      %p97 = scmp.eq.s32.totalorder %s18, 0
      %p98 = por %p96, %p97
      %p99 = scmp.ne.s32.totalorder %s87, %s88
      %p100 = scmp.eq.s32.totalorder %s19, 1
      %p101 = por %p99, %p100
      %p103 = scmp.ne.s32.totalorder %s88, %s102
      %p104 = scmp.eq.s32.totalorder %s19, 0
      %p105 = por %p103, %p104
      %s106 = ssub.s32 %s20, %s32
      %s107 = ssub.s32 %s21, %s28
      %s108 = sor.u32 %s106, %s107
      %p109 = scmp.eq.s32.totalorder %s108, 0
      %s111 = sadd.s32 %s110, 1
      %s112 = scalar_select %p109, %s110, %s111
      %p115 = pneg %p109
      %p116 = scmp.eq.s32.totalorder %s13, 1
      %p117 = por %p115, %p116
      %p118 = scmp.ne.s32.totalorder %s110, %s113
      %p119 = scmp.eq.s32.totalorder %s13, 0
      %p120 = por %p118, %p119
      %p121 = scmp.ne.s32.totalorder %s110, %s113
      %p122 = scmp.eq.s32.totalorder %s18, 1
      %p123 = por %p121, %p122
      %p124 = scmp.ne.s32.totalorder %s113, %s114
      %p125 = scmp.eq.s32.totalorder %s18, 0
      %p126 = por %p124, %p125
      %p127 = scmp.ne.s32.totalorder %s113, %s114
      %p128 = scmp.eq.s32.totalorder %s19, 1
      %p129 = por %p127, %p128
      %p131 = scmp.ne.s32.totalorder %s114, %s130
      %p132 = scmp.eq.s32.totalorder %s19, 0
      %p133 = por %p131, %p132
      %s134 = ssub.s32 %s20, %s32
      %s135 = ssub.s32 %s21, %s28
      %s136 = sor.u32 %s134, %s135
      %p137 = scmp.eq.s32.totalorder %s136, 0
      %s139 = sadd.s32 %s138, 1
      %s140 = scalar_select %p137, %s138, %s139
      %p143 = pneg %p137
      %p144 = scmp.eq.s32.totalorder %s13, 1
      %p145 = por %p143, %p144
      %p146 = scmp.ne.s32.totalorder %s138, %s141
      %p147 = scmp.eq.s32.totalorder %s13, 0
      %p148 = por %p146, %p147
      %p149 = scmp.ne.s32.totalorder %s138, %s141
      %p150 = scmp.eq.s32.totalorder %s18, 1
      %p151 = por %p149, %p150
      %p152 = scmp.ne.s32.totalorder %s141, %s142
      %p153 = scmp.eq.s32.totalorder %s18, 0
      %p154 = por %p152, %p153
      %p155 = scmp.ne.s32.totalorder %s141, %s142
      %p156 = scmp.eq.s32.totalorder %s19, 1
      %p157 = por %p155, %p156
      %p159 = scmp.ne.s32.totalorder %s142, %s158
      %p160 = scmp.eq.s32.totalorder %s19, 0
      %p161 = por %p159, %p160
      %p162 = scmp.le.s32.totalorder 1, %s13
      %p163 = scmp.lt.s32.totalorder %s13, 3
      %p164 = pnand %p162, %p163
      %p165 = pneg %p164
      // Predicated region
      $region9: #{tpu_custom_call.1} parent=5 // pred_check
        _
      $region10: #{tpu_custom_call.1} parent=5 // pred_check_branch
        %167 = sbr.rel (%p164) target = $region12
      $region11: #{tpu_custom_call.1} parent=5 // pred_region
        %s168 = ssub.s32 %s13, 1
        // Predicated region
        $region13: #{tpu_custom_call.1} parent=11 // pred_check
          %p169 = pneg %p98
        $region14: #{tpu_custom_call.1} parent=11 // pred_check_branch
          %171 = sbr.rel (%p169) target = $region16
        $region15: #{tpu_custom_call.1} parent=11 // pred_region
          _
        $region16: #{tpu_custom_call.1} parent=11 // pred_fallthru
          _
      $region12: #{tpu_custom_call.1} parent=5 // pred_fallthru
        _
      %p172 = scmp.lt.s32.totalorder %s13, 2
      // Predicated region
      $region17: #{tpu_custom_call.1} parent=5 // pred_check
        %p173 = pneg %p172
      $region18: #{tpu_custom_call.1} parent=5 // pred_check_branch
        %175 = sbr.rel (%p173) target = $region20
      $region19: #{tpu_custom_call.1} parent=5 // pred_region
        // Predicated region
        $region21: #{tpu_custom_call.1} parent=19 // pred_check
          %p176 = pneg %p45
        $region22: #{tpu_custom_call.1} parent=19 // pred_check_branch
          %178 = sbr.rel (%p176) target = $region24
        $region23: #{tpu_custom_call.1} parent=19 // pred_region
          %p179 = scmp.lt.s32.totalorder %s20, 1
          %s180 = scalar_select %p179, %s20, 1
          %s181 = smul.addr %s180, 5
          %s182 = smul.addr %s181, 8
          %s183 = scalar_lea.vmem %s0, %s182
        $region24: #{tpu_custom_call.1} parent=19 // pred_fallthru
          _
        // Predicated region
        $region25: #{tpu_custom_call.1} parent=19 // pred_check
          %p184 = pneg %p71
        $region26: #{tpu_custom_call.1} parent=19 // pred_check_branch
          %186 = sbr.rel (%p184) target = $region28
        $region27: #{tpu_custom_call.1} parent=19 // pred_region
          %p187 = scmp.lt.s32.totalorder %s20, 1
          %s188 = scalar_select %p187, %s20, 1
          %s189 = smul.addr %s188, 8
          %s190 = scalar_lea.vmem %s1, %s189
        $region28: #{tpu_custom_call.1} parent=19 // pred_fallthru
          _
        // Predicated region
        $region29: #{tpu_custom_call.1} parent=19 // pred_check
          %p191 = pneg %p120
        $region30: #{tpu_custom_call.1} parent=19 // pred_check_branch
          %193 = sbr.rel (%p191) target = $region32
        $region31: #{tpu_custom_call.1} parent=19 // pred_region
          %s194 = smul.u32 2, %s21
          %p195 = scmp.lt.s32.totalorder %s20, 1
          %s196 = scalar_select %p195, %s20, 1
          %p197 = scmp.lt.s32.totalorder %s194, 1
          %s198 = scalar_select %p197, %s194, 1
          %s199 = smul.addr %s196, 10
          %s200 = sadd.s32 %s198, %s199
          %s201 = smul.addr %s200, 8
          %s202 = scalar_lea.vmem %s3, %s201
          %s203 = smul.u32 2, %s21
        $region32: #{tpu_custom_call.1} parent=19 // pred_fallthru
          _
      $region20: #{tpu_custom_call.1} parent=5 // pred_fallthru
        _
      %p204 = scmp.le.s32.totalorder 1, %s13
      %p205 = scmp.lt.s32.totalorder %s13, 3
      %p206 = pnand %p204, %p205
      %p207 = pneg %p206
      // Predicated region
      $region33: #{tpu_custom_call.1} parent=5 // pred_check
        _
      $region34: #{tpu_custom_call.1} parent=5 // pred_check_branch
        %209 = sbr.rel (%p206) target = $region36
      $region35: #{tpu_custom_call.1} parent=5 // pred_region
        %s210 = ssub.s32 %s13, 1
        %p211 = scmp.lt.s32.totalorder %s22, 1
        %s212 = scalar_select %p211, %s22, 1
        %s213 = smul.addr %s212, 5
        %s214 = smul.addr %s213, 8
        %s215 = scalar_lea.vmem %s0, %s214
        %p216 = pneg %p51
        %p217 = pneg %p48
        %p218 = scmp.lt.s32.totalorder %s22, 1
        %s219 = scalar_select %p218, %s22, 1
        %s220 = smul.addr %s219, 8
        %s221 = scalar_lea.vmem %s1, %s220
        %p222 = pneg %p77
        %p223 = pneg %p74
        %p224 = pneg %p98
        %p225 = pneg %p95
        %s226 = smul.u32 2, %s23
        %p227 = scmp.lt.s32.totalorder %s22, 1
        %s228 = scalar_select %p227, %s22, 1
        %p229 = scmp.lt.s32.totalorder %s226, 1
        %s230 = scalar_select %p229, %s226, 1
        %s231 = smul.addr %s228, 10
        %s232 = sadd.s32 %s230, %s231
        %s233 = smul.addr %s232, 8
        %s234 = scalar_lea.vmem %s3, %s233
        %p235 = pneg %p126
        %p236 = pneg %p123
        %p237 = pneg %p154
        %p238 = pneg %p151
        %s239 = sand.u32 %s141, 1
        %s240 = scalar_lea.sflag [#allocation3], %s239
        %s241 = sand.u32 %s141, 1
        %s242 = smul.addr %s241, 16
        %s243 = scalar_lea.vmem [#allocation2], %s242
        %p244 = scmp.lt.s32.totalorder %s22, 1
        %s245 = scalar_select %p244, %s22, 1
        %s246 = smul.addr %s245, 5
        %s247 = smul.addr %s246, 8
        %s248 = scalar_lea.vmem %s0, %s247
        %p249 = scmp.lt.s32.totalorder %s22, 1
        %s250 = scalar_select %p249, %s22, 1
        %s251 = smul.addr %s250, 8
        %s252 = scalar_lea.vmem %s1, %s251
        %s253 = smul.u32 2, %s23
        %p254 = scmp.lt.s32.totalorder %s22, 1
        %s255 = scalar_select %p254, %s22, 1
        %p256 = scmp.lt.s32.totalorder %s253, 1
        %s257 = scalar_select %p256, %s253, 1
        %s258 = smul.addr %s255, 10
        %s259 = sadd.s32 %s257, %s258
        %s260 = smul.addr %s259, 8
        %s261 = scalar_lea.vmem %s3, %s260
        %s262 = smul.u32 2, %s23
        %s263 = smul.u32 2, %s23
        %v264 = vld [vmem:[%s261] sm:$0xff]
        %v265 = vld [vmem:[%s261 + $0x8] sm:$0xff]
        %v266 = vld [vmem:[%s261 + $0x10] sm:$0xff]
        %v267 = vld [vmem:[%s261 + $0x18] sm:$0xff]
        %v268 = vld [vmem:[%s261 + $0x20] sm:$0xff]
        %v269 = vld [vmem:[%s261 + $0x28] sm:$0xff]
        %v270 = vld [vmem:[%s261 + $0x30] sm:$0xff]
        %v271 = vld [vmem:[%s261 + $0x38] sm:$0xff]
        %v272 = vld [vmem:[%s261 + $0x40] sm:$0xf]
        %v273 = vld [vmem:[%s261 + $0x48] sm:$0xf]
        %v274 = vld [vmem:[%s248] sm:$0xff]
        %v275 = vld [vmem:[%s248 + $0x8] sm:$0xff]
        %v276 = vld [vmem:[%s248 + $0x10] sm:$0xff]
        %v277 = vld [vmem:[%s248 + $0x18] sm:$0xff]
        %v278 = vld [vmem:[%s248 + $0x20] sm:$0xf]
        %280 = vset.pattern.permute.xlu0 0
        %281 = vperm.xlu0 %280, %v274
        %v282 = vpop.permute.xlu0 %281
        %285 = vset.pattern.permute.xlu0 0
        %286 = vperm.xlu0 %285, %v275
        %v287 = vpop.permute.xlu0 %286
        %290 = vset.pattern.permute.xlu0 0
        %291 = vperm.xlu0 %290, %v276
        %v292 = vpop.permute.xlu0 %291
        %295 = vset.pattern.permute.xlu0 0
        %296 = vperm.xlu0 %295, %v277
        %v297 = vpop.permute.xlu0 %296
        %300 = vset.pattern.permute.xlu0 0
        %301 = vperm.xlu0 %300, %v278
        %v302 = vpop.permute.xlu0 %301
        %v304 = vmul.f32 %v264, %v282
        %v305 = vmul.f32 %v265, %v282
        %v306 = vmul.f32 %v266, %v287
        %v307 = vmul.f32 %v267, %v287
        %v308 = vmul.f32 %v268, %v292
        %v309 = vmul.f32 %v269, %v292
        %v310 = vmul.f32 %v270, %v297
        %v311 = vmul.f32 %v271, %v297
        %v312 = vmul.f32 %v272, %v302
        %v313 = vmul.f32 %v273, %v302
        %v314 = vld [vmem:[%s2] sm:$0xff]
        %vm315 = vcmask 293888
        %v317 = vsel %vm315, %v314, 0
        %vm319 = vcmask 1043456
        %v321 = vsel %vm319, %v312, 0
        %v324 = vsel %vm319, %v313, 0
        %326 = vmatprep.subr.mxu0 0.0
        %327 = vmatpush1.msra.mxu0 0.0
        %328 = vmatprep.subr.mxu0 0.0
        %329 = vmatpush1.msra.mxu0 0.0
        %330 = vmatprep.subr.mxu0 0.0
        %331 = vmatpush1.msra.mxu0 0.0
        %332 = vmatprep.subr.mxu0 0.0
        %333 = vmatpush1.msra.mxu0 0.0
        %334 = vmatprep.subr.mxu0 0.0
        %335 = vmatpush1.msra.mxu0 0.0
        %336 = vmatprep.subr.mxu0 0.0
        %337 = vmatpush1.msra.mxu0 0.0
        %338 = vmatprep.subr.mxu0 0.0
        %339 = vmatpush1.msra.mxu0 0.0
        %340 = vmatprep.subr.mxu0 0.0
        %341 = vmatpush1.msra.mxu0 0.0
        %342 = vmatprep.subr.mxu0 0.0
        %343 = vmatpush1.msra.mxu0 0.0
        %344 = vmatprep.subr.mxu0 0.0
        %345 = vmatpush1.msra.mxu0 0.0
        %346 = vmatprep.subr.mxu0 0.0
        %347 = vmatpush1.msra.mxu0 0.0
        %348 = vmatprep.subr.mxu0 %v324
        %349 = vmatpush1.msra.mxu0 %v321
        %350 = vmatprep.subr.mxu0 %v311
        %351 = vmatpush1.msra.mxu0 %v310
        %352 = vmatprep.subr.mxu0 %v309
        %353 = vmatpush1.msra.mxu0 %v308
        %354 = vmatprep.subr.mxu0 %v307
        %355 = vmatpush1.msra.mxu0 %v306
        %356 = vmatprep.subr.mxu0 %v305
        %357 = vmatpush1.msra.mxu0 %v304
        %358 = vmatprep.subr.mxu0 0.0
        %359 = vmatpush2.msra.mxu0 0.0
        %360 = vmatprep.subr.mxu0 0.0
        %361 = vmatpush2.msra.mxu0 0.0
        %362 = vmatprep.subr.mxu0 0.0
        %363 = vmatpush2.msra.mxu0 0.0
        %364 = vmatprep.subr.mxu0 0.0
        %365 = vmatpush2.msra.mxu0 0.0
        %366 = vmatprep.subr.mxu0 0.0
        %367 = vmatpush2.msra.mxu0 0.0
        %368 = vmatprep.subr.mxu0 0.0
        %369 = vmatpush2.msra.mxu0 0.0
        %370 = vmatprep.subr.mxu0 0.0
        %371 = vmatpush2.msra.mxu0 0.0
        %372 = vmatprep.subr.mxu0 0.0
        %373 = vmatpush2.msra.mxu0 0.0
        %374 = vmatprep.subr.mxu0 0.0
        %375 = vmatpush2.msra.mxu0 0.0
        %376 = vmatprep.subr.mxu0 0.0
        %377 = vmatpush2.msra.mxu0 0.0
        %378 = vmatprep.subr.mxu0 0.0
        %379 = vmatpush2.msra.mxu0 0.0
        %380 = vmatprep.subr.mxu0 0.0
        %381 = vmatpush2.msra.mxu0 0.0
        %382 = vmatprep.subr.mxu0 0.0
        %383 = vmatpush2.msra.mxu0 0.0
        %384 = vmatprep.subr.mxu0 0.0
        %385 = vmatpush2.msra.mxu0 0.0
        %386 = vmatprep.subr.mxu0 0.0
        %387 = vmatpush2.msra.mxu0 0.0
        %388 = vmatprep.subr.mxu0 0.0
        %389 = vmatpush2.msra.mxu0 0.0
        %390 = vmatprep.mubr.f32.mxu0 0.0
        %391 = vmatmul.mubr.f32.gmra.mxu0 %v317
        %v392 = vpop.f32.mrf.mxu0
        %v393 = vadd.f32 0.0, %v392
        %v394 = vpop.f32.mrf.mxu0
        %v395 = vadd.f32 0.0, %v394
        %396 = vdwg.mxu0
        %v397 = vld [vmem:[%s252] sm:$0xff]
        %399 = vset.pattern.permute.xlu0 0
        %400 = vperm.xlu0 %399, %v397
        %v401 = vpop.permute.xlu0 %400
        %v403 = vmul.f32 %v393, %v401
        %v404 = vmul.f32 %v395, %v401
        %405 = vst [vmem:[%s243] sm:$0xff] %v403
        %406 = vst [vmem:[%s243 + $0x8] sm:$0xff] %v404
        %s407 = sand.u32 %s141, 1
        %s408 = scalar_lea.sflag [#allocation3], %s407
        %s409 = sand.u32 %s141, 1
        %s410 = smul.addr %s409, 16
        %s411 = scalar_lea.vmem [#allocation2], %s410
        // Predicated region
        $region37: #{tpu_custom_call.1} parent=35 // pred_check
          %p412 = pneg %p151
        $region38: #{tpu_custom_call.1} parent=35 // pred_check_branch
          %414 = sbr.rel (%p412) target = $region40
        $region39: #{tpu_custom_call.1} parent=35 // pred_region
          %s415 = smul.u32 2, %s23
          %s417 = ssub.s32 256, 256
          %418 = vsyncadd %s408, %s417
          %s419 = smul.addr %s22, 2
          %s420 = sadd.s32 %s415, %s419
          %s421 = smul.addr %s420, 128
          %s422 = scalar_lea.hbm %s4, %s421
          %s424 = sshll.u32 %s411, 4
          %s425 = int_to_ptr.vmem [resolvable:$true] %s424
          %427 = dma.vmem_to_hbm [thread:$0]  %s425, 256, %s422, %s408
        $region40: #{tpu_custom_call.1} parent=35 // pred_fallthru
          _
      $region36: #{tpu_custom_call.1} parent=5 // pred_fallthru
        _
      %p428 = scmp.le.s32.totalorder 2, %s13
      // Predicated region
      $region41: #{tpu_custom_call.1} parent=5 // pred_check
        %p429 = pneg %p428
      $region42: #{tpu_custom_call.1} parent=5 // pred_check_branch
        %431 = sbr.rel (%p429) target = $region44
      $region43: #{tpu_custom_call.1} parent=5 // pred_region
        %s432 = ssub.s32 %s13, 2
        // Predicated region
        $region45: #{tpu_custom_call.1} parent=43 // pred_check
          %p433 = pneg %p157
        $region46: #{tpu_custom_call.1} parent=43 // pred_check_branch
          %435 = sbr.rel (%p433) target = $region48
        $region47: #{tpu_custom_call.1} parent=43 // pred_region
          %s436 = sand.u32 %s142, 1
          %s437 = scalar_lea.sflag [#allocation3], %s436
          %s438 = sand.u32 %s142, 1
          %s439 = smul.addr %s438, 16
          %s440 = scalar_lea.vmem [#allocation2], %s439
          %441 = dma.done %s437, 256
        $region48: #{tpu_custom_call.1} parent=43 // pred_fallthru
          _
      $region44: #{tpu_custom_call.1} parent=5 // pred_fallthru
        _
    $region6: #{tpu_custom_call.1} parent=1 // loop_footer
      %s17 = sadd.s32 1, %s13
    $region7: #{tpu_custom_call.1} parent=1 // loop_footer_branch
      %12 = sbr.rel target = $region3
    $region8: #{tpu_custom_call.1} parent=1 // loop_exit
      _
    %442 = vsyncpa [#allocation3], 1
    %s443 = scalar_lea.sflag [#allocation3], 1
    %444 = vsyncpa %s443, 1

</llo_original>
